<compile_context>
chip_gen: v7x
topology: tpu7x:2x2x1
jax: 0.10.0
libtpu: 0.0.40
codegen_flags: <defaults>
</compile_context>

<pallas_src>
import functools

import numpy as np
import jax
import jax.numpy as jnp
from jax import lax
from jax.experimental import pallas as pl
from jax.experimental.pallas import tpu as pltpu


def _round_up(x, m):
    return ((x + m - 1) // m) * m


def _vmem_budgets():
    """Returns (tile-selection budget, vmem_limit_bytes) for this chip."""
    try:
        cap = int(pltpu.get_tpu_info().vmem_capacity_bytes)
    except Exception:
        cap = 64 * 1024 * 1024  # conservative fallback (v7x per-TC VMEM)
    # Working-set budget ~35% of physical VMEM leaves headroom for the
    # compiler's own scratch / spills / deeper buffering; ask the compiler for
    # a scoped limit of ~70%.
    return int(0.35 * cap), int(0.70 * cap)


def _select_tiles(Sq, Sk, Hp, Dvp, itemsize, budget, batch):
    """VMEM-aware (tq, tk). Hp/Dvp are already multiples of 128; sequence
    tiles stay multiples of 8 (sublane) and prefer 512/256/128 (MXU cadence)."""

    def step_bytes(tq, tk):
        io = 2 * (tq * Hp + tk * Hp + tk * Dvp + tq * Dvp) * itemsize  # 2x-buffered blocks
        score = tq * tk * (4 + itemsize)                               # f32 scores + cast copy
        acc = tq * Dvp * 4                                             # f32 accumulator
        return io + score + acc

    def seq_tile(S):
        s8 = _round_up(S, 8)
        for c in (512, 256, 128):
            if s8 >= c:
                return c
        return s8

    tq = seq_tile(Sq)
    tk = seq_tile(Sk)

    # Keep K/V fully resident across q-tiles (single reduction block, block
    # index constant -> fetched once) when the whole padded Sk fits.
    sk8 = _round_up(Sk, 8)
    if step_bytes(tq, sk8) <= budget:
        tk = sk8

    # Shrink tq first, then tk, until the working set fits the budget.
    while step_bytes(tq, tk) > budget and tq > 8 and tq % 16 == 0:
        tq //= 2
    while step_bytes(tq, tk) > budget and tk > 128 and tk % 16 == 0:
        tk //= 2

    # v7x has 2 TensorCores sharded over the "parallel" axes: expose >= 2
    # parallel blocks when the shape allows it.
    if batch * (_round_up(Sq, tq) // tq) < 2 and tq % 16 == 0:
        tq //= 2

    return tq, tk


def _pad3(x, target_shape):
    pads = [(0, t - s) for s, t in zip(x.shape, target_shape)]
    if any(hi for _, hi in pads):
        return jnp.pad(x, pads)
    return x


def _sdpa_kernel(q_ref, k_ref, v_ref, o_ref, *scratch, inv_scale):
    # q_ref: (tq, Hp), k_ref: (tk, Hp), v_ref: (tk, Dvp), o_ref: (tq, Dvp).
    # scratch: optional f32 (tq, Dvp) accumulator (only for non-f32 outputs);
    # otherwise we accumulate directly into the resident output block.
    acc_ref = scratch[0] if scratch else o_ref
    kb = pl.program_id(2)

    @pl.when(kb == 0)
    def _():
        acc_ref[...] = jnp.zeros_like(acc_ref)

    q = q_ref[...]
    k = k_ref[...]
    v = v_ref[...]

    # scores (tq, tk): contract Q and K over the hidden axis on the MXU; no
    # materialized K transpose. f32 accumulation.
    qk = lax.dot_general(
        q, k,
        dimension_numbers=(((1,), (1,)), ((), ())),
        preferred_element_type=jnp.float32,
    )

    # (Q K^T) @ V accumulated in f32 across Sk tiles. Scores cast to V's
    # dtype for the MXU feed (no-op for f32 inputs).
    acc_ref[...] += lax.dot_general(
        qk.astype(v.dtype), v,
        dimension_numbers=(((1,), (0,)), ((), ())),
        preferred_element_type=jnp.float32,
    )

    @pl.when(kb == pl.num_programs(2) - 1)
    def _():
        # 1/sqrt(h) applied once per q-tile in the epilogue: exactly
        # equivalent to scaling the scores because there is no softmax.
        o_ref[...] = (acc_ref[...] * inv_scale).astype(o_ref.dtype)


def scaled_dot_product_attention(Q, K, V):
    """Pallas TPU ScaledDotProductAttention.forward: (Q @ K^T / sqrt(H)) @ V."""
    B, Sq, H = Q.shape
    Bk, Sk, Hk = K.shape
    Bv, Skv, Dv = V.shape
    assert B == Bk == Bv and H == Hk and Sk == Skv

    inv_scale = float(1.0 / np.sqrt(H))
    dtype = Q.dtype
    itemsize = jnp.dtype(dtype).itemsize

    budget, vmem_limit = _vmem_budgets()

    # Lane-dense padding of the contracted / output feature dims.
    Hp = _round_up(H, 128)
    Dvp = _round_up(Dv, 128)

    tq, tk = _select_tiles(Sq, Sk, Hp, Dvp, itemsize, budget, B)
    Sq_p = _round_up(Sq, tq)
    Sk_p = _round_up(Sk, tk)
    n_q = Sq_p // tq
    n_k = Sk_p // tk

    Qp = _pad3(Q, (B, Sq_p, Hp))
    Kp = _pad3(K, (B, Sk_p, Hp))
    Vp = _pad3(V, (B, Sk_p, Dvp))

    # f32 outputs accumulate in-place in the resident output block.
    use_f32_scratch = jnp.dtype(dtype) != jnp.dtype(jnp.float32)
    scratch_shapes = (
        [pltpu.VMEM((tq, Dvp), jnp.float32)] if use_f32_scratch else []
    )

    kernel = functools.partial(_sdpa_kernel, inv_scale=inv_scale)

    # K/V are only re-streamed per q-tile when the reduction axis is tiled
    # (block index changes); with a single full-Sk block they are read once.
    kv_reads = n_q if n_k > 1 else 1
    cost = pl.CostEstimate(
        flops=2 * B * Sq_p * Sk_p * (Hp + Dvp),
        transcendentals=0,
        bytes_accessed=itemsize * (B * Sq_p * Hp
                                   + kv_reads * B * Sk_p * (Hp + Dvp)
                                   + B * Sq_p * Dvp),
    )

    out = pl.pallas_call(
        kernel,
        out_shape=jax.ShapeDtypeStruct((B, Sq_p, Dvp), dtype),
        grid_spec=pltpu.PrefetchScalarGridSpec(
            num_scalar_prefetch=0,
            grid=(B, n_q, n_k),
            in_specs=[
                pl.BlockSpec((pl.Squeezed(), tq, Hp),
                             lambda b, qi, ki: (b, qi, 0)),
                pl.BlockSpec((pl.Squeezed(), tk, Hp),
                             lambda b, qi, ki: (b, ki, 0)),
                pl.BlockSpec((pl.Squeezed(), tk, Dvp),
                             lambda b, qi, ki: (b, ki, 0)),
            ],
            out_specs=pl.BlockSpec((pl.Squeezed(), tq, Dvp),
                                   lambda b, qi, ki: (b, qi, 0)),
            scratch_shapes=scratch_shapes,
        ),
        compiler_params=pltpu.CompilerParams(
            dimension_semantics=("parallel", "parallel", "arbitrary"),
            vmem_limit_bytes=vmem_limit,
        ),
        cost_estimate=cost,
    )(Qp, Kp, Vp)

    if Sq_p != Sq or Dvp != Dv:
        out = out[:, :Sq, :Dv]
    return out


if __name__ == "__main__":
    # Small shapes consistent with the module: batch=2, seq=8, hidden=32.
    B, S, H = 2, 8, 32
    key = jax.random.PRNGKey(0)
    kq, kk, kv = jax.random.split(key, 3)
    Q = jax.random.normal(kq, (B, S, H), dtype=jnp.float32)
    K = jax.random.normal(kk, (B, S, H), dtype=jnp.float32)
    V = jax.random.normal(kv, (B, S, H), dtype=jnp.float32)

    out = jax.block_until_ready(scaled_dot_product_attention(Q, K, V))
    assert out.shape == (B, S, H) and out.dtype == Q.dtype

    # Pure-JAX reference at HIGHEST precision. The tolerance is set to also
    # cover MXU multi-pass f32 matmul differences between the XLA reference
    # and the Mosaic kernel; gross bugs (wrong scale/tiling/accumulation) are
    # still far outside it.
    ref = jnp.einsum("bqh,bkh->bqk", Q, K,
                     precision=lax.Precision.HIGHEST) / np.sqrt(H)
    ref = jnp.einsum("bqk,bkd->bqd", ref, V, precision=lax.Precision.HIGHEST)
    np.testing.assert_allclose(np.asarray(out), np.asarray(ref),
                               rtol=1e-2, atol=1e-2)

    print("KERNEL_OK")
</pallas_src>

<mosaic_0001>
module attributes {stable_mosaic.version = 11 : i64} {
  func.func @_sdpa_kernel(%arg0: i32, %arg1: i32, %arg2: i32, %arg3: memref<1x8x128xf32, #tpu.memory_space<vmem>>, %arg4: memref<1x8x128xf32, #tpu.memory_space<vmem>>, %arg5: memref<1x8x128xf32, #tpu.memory_space<vmem>>, %arg6: memref<1x8x128xf32, #tpu.memory_space<vmem>>) attributes {dimension_semantics = [#tpu.dimension_semantics<parallel>, #tpu.dimension_semantics<parallel>, #tpu.dimension_semantics<arbitrary>], iteration_bounds = array<i64: 2, 1, 1>, scalar_prefetch = 0 : i64, scratch_operands = 0 : i64, tpu.core_type = #tpu.core_type<tc>, window_params = [{transform_indices = @transform_0, window_bounds = array<i64: 1, 8, 128>}, {transform_indices = @transform_1, window_bounds = array<i64: 1, 8, 128>}, {transform_indices = @transform_2, window_bounds = array<i64: 1, 8, 128>}, {transform_indices = @transform_3, window_bounds = array<i64: 1, 8, 128>}]} {
    %c0_i32 = arith.constant 0 : i32
    %0 = arith.cmpi eq, %arg2, %c0_i32 : i32
    %1 = arith.extui %0 : i1 to i32
    %c0_i32_0 = arith.constant 0 : i32
    %2 = arith.cmpi ne, %1, %c0_i32_0 : i32
    scf.if %2 {
      %cst_18 = arith.constant 0.000000e+00 : f32
      %20 = vector.broadcast %cst_18 : f32 to vector<8x128xf32>
      %c0_19 = arith.constant 0 : index
      %c0_20 = arith.constant 0 : index
      %c0_21 = arith.constant 0 : index
      %21 = vector.load %arg6[%c0_19, %c0_20, %c0_21] : memref<1x8x128xf32, #tpu.memory_space<vmem>>, vector<1x8x128xf32>
      %22 = vector.shape_cast %21 : vector<1x8x128xf32> to vector<8x128xf32>
      %23 = vector.shape_cast %20 : vector<8x128xf32> to vector<1x8x128xf32>
      tpu.vector_store %arg6[%c0_19, %c0_20, %c0_21], %23 {strides = array<i32>} : memref<1x8x128xf32, #tpu.memory_space<vmem>>, vector<1x8x128xf32>,
    } else {
    }
    %c0 = arith.constant 0 : index
    %c0_1 = arith.constant 0 : index
    %c0_2 = arith.constant 0 : index
    %3 = vector.load %arg3[%c0, %c0_1, %c0_2] : memref<1x8x128xf32, #tpu.memory_space<vmem>>, vector<1x8x128xf32>
    %4 = vector.shape_cast %3 : vector<1x8x128xf32> to vector<8x128xf32>
    %c0_3 = arith.constant 0 : index
    %c0_4 = arith.constant 0 : index
    %c0_5 = arith.constant 0 : index
    %5 = vector.load %arg4[%c0_3, %c0_4, %c0_5] : memref<1x8x128xf32, #tpu.memory_space<vmem>>, vector<1x8x128xf32>
    %6 = vector.shape_cast %5 : vector<1x8x128xf32> to vector<8x128xf32>
    %c0_6 = arith.constant 0 : index
    %c0_7 = arith.constant 0 : index
    %c0_8 = arith.constant 0 : index
    %7 = vector.load %arg5[%c0_6, %c0_7, %c0_8] : memref<1x8x128xf32, #tpu.memory_space<vmem>>, vector<1x8x128xf32>
    %8 = vector.shape_cast %7 : vector<1x8x128xf32> to vector<8x128xf32>
    %cst = arith.constant dense<0.000000e+00> : vector<8x8xf32>
    %9 = tpu.matmul %4, %6, %cst {dimension_numbers = #tpu.dot_dimension_numbers<[1], [1], [0], [0], [0, 0, 1, 0], [], []>} : vector<8x128xf32>, vector<8x128xf32>, vector<8x8xf32> -> vector<8x8xf32>
    %c0_9 = arith.constant 0 : index
    %c0_10 = arith.constant 0 : index
    %c0_11 = arith.constant 0 : index
    %10 = vector.load %arg6[%c0_9, %c0_10, %c0_11] : memref<1x8x128xf32, #tpu.memory_space<vmem>>, vector<1x8x128xf32>
    %11 = vector.shape_cast %10 : vector<1x8x128xf32> to vector<8x128xf32>
    %cst_12 = arith.constant dense<0.000000e+00> : vector<8x128xf32>
    %12 = tpu.matmul %9, %8, %cst_12 {dimension_numbers = #tpu.dot_dimension_numbers<[1], [0], [0], [1], [0, 0, 1, 1], [], []>} : vector<8x8xf32>, vector<8x128xf32>, vector<8x128xf32> -> vector<8x128xf32>
    %13 = arith.addf %11, %12 : vector<8x128xf32>
    %c0_13 = arith.constant 0 : index
    %c0_14 = arith.constant 0 : index
    %c0_15 = arith.constant 0 : index
    %14 = vector.load %arg6[%c0_13, %c0_14, %c0_15] : memref<1x8x128xf32, #tpu.memory_space<vmem>>, vector<1x8x128xf32>
    %15 = vector.shape_cast %14 : vector<1x8x128xf32> to vector<8x128xf32>
    %16 = vector.shape_cast %13 : vector<8x128xf32> to vector<1x8x128xf32>
    tpu.vector_store %arg6[%c0_13, %c0_14, %c0_15], %16 {strides = array<i32>} : memref<1x8x128xf32, #tpu.memory_space<vmem>>, vector<1x8x128xf32>,
    %c0_i32_16 = arith.constant 0 : i32
    %17 = arith.cmpi eq, %arg2, %c0_i32_16 : i32
    %18 = arith.extui %17 : i1 to i32
    %c0_i32_17 = arith.constant 0 : i32
    %19 = arith.cmpi ne, %18, %c0_i32_17 : i32
    scf.if %19 {
      %c0_18 = arith.constant 0 : index
      %c0_19 = arith.constant 0 : index
      %c0_20 = arith.constant 0 : index
      %20 = vector.load %arg6[%c0_18, %c0_19, %c0_20] : memref<1x8x128xf32, #tpu.memory_space<vmem>>, vector<1x8x128xf32>
      %21 = vector.shape_cast %20 : vector<1x8x128xf32> to vector<8x128xf32>
      %cst_21 = arith.constant 0.176776692 : f32
      %22 = vector.broadcast %cst_21 : f32 to vector<8x128xf32>
      %23 = arith.mulf %21, %22 : vector<8x128xf32>
      %c0_22 = arith.constant 0 : index
      %c0_23 = arith.constant 0 : index
      %c0_24 = arith.constant 0 : index
      %24 = vector.load %arg6[%c0_22, %c0_23, %c0_24] : memref<1x8x128xf32, #tpu.memory_space<vmem>>, vector<1x8x128xf32>
      %25 = vector.shape_cast %24 : vector<1x8x128xf32> to vector<8x128xf32>
      %26 = vector.shape_cast %23 : vector<8x128xf32> to vector<1x8x128xf32>
      tpu.vector_store %arg6[%c0_22, %c0_23, %c0_24], %26 {strides = array<i32>} : memref<1x8x128xf32, #tpu.memory_space<vmem>>, vector<1x8x128xf32>,
    } else {
    }
    return
  }
  func.func @transform_0(%arg0: i32, %arg1: i32, %arg2: i32) -> (i32, i32, i32) {
    %c0_i32 = arith.constant 0 : i32
    %c0_i32_0 = arith.constant 0 : i32
    return %arg0, %arg1, %c0_i32 : i32, i32, i32
  }
  func.func @transform_1(%arg0: i32, %arg1: i32, %arg2: i32) -> (i32, i32, i32) {
    %c0_i32 = arith.constant 0 : i32
    %c0_i32_0 = arith.constant 0 : i32
    return %arg0, %arg2, %c0_i32 : i32, i32, i32
  }
  func.func @transform_2(%arg0: i32, %arg1: i32, %arg2: i32) -> (i32, i32, i32) {
    %c0_i32 = arith.constant 0 : i32
    %c0_i32_0 = arith.constant 0 : i32
    return %arg0, %arg2, %c0_i32 : i32, i32, i32
  }
  func.func @transform_3(%arg0: i32, %arg1: i32, %arg2: i32) -> (i32, i32, i32) {
    %c0_i32 = arith.constant 0 : i32
    %c0_i32_0 = arith.constant 0 : i32
    return %arg0, %arg1, %c0_i32 : i32, i32, i32
  }
}

</mosaic_0001>

<llo_original>
// kernel: tpu_custom_call.1
$region0: #{tpu_custom_call.1}
  #allocation0 [shape = 'u32[]', space=smem, size = 0x4, offset = 0x4, fixed_abs, tag = 'smem constant byte address 0x4 - core index']
  #allocation1 [shape = 'u32[144,128]{1,0:T(1,128)}', space=vmem, size = 0x12000, scoped, tag = 'internal scratch']
  %s0 = inlined_call_operand.hbm [shape: f32[2,8,128], index: 0, kind: input, shape index: {}]
  %s1 = inlined_call_operand.hbm [shape: f32[2,8,128], index: 1, kind: input, shape index: {}]
  %s2 = inlined_call_operand.hbm [shape: f32[2,8,128], index: 2, kind: input, shape index: {}]
  %s3 = inlined_call_operand.hbm [shape: f32[2,8,128], index: 3, kind: output, shape index: {}]
  %s4 = sld [smem:[#allocation0]]
  $region65: #{tpu_custom_call.1} parent=0
    _
  %s6 = ssub.s32 1, %s4
  %s7 = scalar_select 0, %s6, %s4
  $region1: #{tpu_custom_call.1} parent=0
    #allocation2 [shape = 'u8[8192]{0}', space=vmem, size = 0x2000, scoped, tag = 'input window, operand 0']
    #allocation3 [shape = 's32[2]{0}', space=sflag, size = 0x8, scoped, tag = 'scoped memory for tpu_custom_call.1']
    #allocation4 [shape = 's32[2]{0}', space=sflag, size = 0x8, scoped, tag = 'scoped memory for tpu_custom_call.1']
    #allocation5 [shape = 'u8[8192]{0}', space=vmem, size = 0x2000, scoped, tag = 'input window, operand 1']
    #allocation6 [shape = 's32[2]{0}', space=sflag, size = 0x8, scoped, tag = 'scoped memory for tpu_custom_call.1']
    #allocation7 [shape = 'u8[8192]{0}', space=vmem, size = 0x2000, scoped, tag = 'input window, operand 2']
    #allocation8 [shape = 'u8[8192]{0}', space=vmem, size = 0x2000, scoped, tag = 'output window, operand 0']
    %8 = vsyncpa [#allocation3], 0
    %s9 = scalar_lea.sflag [#allocation3], 1
    %10 = vsyncpa %s9, 0
    %11 = vsyncpa [#allocation6], 0
    %s12 = scalar_lea.sflag [#allocation6], 1
    %13 = vsyncpa %s12, 0
    %14 = vsyncpa [#allocation4], 0
    %s15 = scalar_lea.sflag [#allocation4], 1
    %16 = vsyncpa %s15, 0
    loop: start=0, step=1, limit=4
    $region2: #{tpu_custom_call.1} parent=1 // loop_pre_header
      _
    $region3: #{tpu_custom_call.1} parent=1 // loop_header
      %s18 = sphi 0, %s22
      %p19 = scmp.ge.s32.totalorder %s18, 4
      %s25 = sphi 0, %s44
      %s26 = sphi 0, %s40
      %s27 = sphi 0, %s36
      %s28 = sphi 0, %s25
      %s29 = sphi 0, %s26
      %s30 = sphi 0, %s27
      %s31 = sphi 0, %s28
      %s32 = sphi 0, %s29
      %s33 = sphi 0, %s30
      %s49 = sphi 0, %s51
      %s52 = sphi 0, %s49
      %s53 = sphi 0, %s52
      %s69 = sphi 0, %s53
      %s77 = sphi 0, %s79
      %s80 = sphi 0, %s77
      %s81 = sphi 0, %s80
      %s97 = sphi 0, %s81
      %s105 = sphi 0, %s107
      %s108 = sphi 0, %s105
      %s109 = sphi 0, %s108
      %s125 = sphi 0, %s109
      %s133 = sphi 0, %s135
      %s136 = sphi 0, %s133
      %s137 = sphi 0, %s136
      %s153 = sphi 0, %s137
    $region4: #{tpu_custom_call.1} parent=1 // loop_header_branch
      %21 = sbr.rel (%p19) target = $region8
    $region5: #{tpu_custom_call.1} parent=1 // loop_body
      %s23 = ssub.s32 %s18, 1
      %s24 = ssub.s32 %s18, 2
      %s34 = sadd.s32 1, %s27
      %p35 = scmp.ge.s32.totalorder %s34, 1
      %s36 = scalar_select %p35, 0, %s34
      %s37 = sadd.s32 1, %s26
      %s38 = scalar_select %p35, %s37, %s26
      %p39 = scmp.ge.s32.totalorder %s38, 1
      %s40 = scalar_select %p39, 0, %s38
      %s41 = sadd.s32 1, %s25
      %s42 = scalar_select %p39, %s41, %s25
      %p43 = scmp.ge.s32.totalorder %s42, 2
      %s44 = scalar_select %p43, 0, %s42
      %s45 = ssub.s32 %s25, %s44
      %s46 = ssub.s32 %s26, %s40
      %s47 = sor.u32 %s45, %s46
      %p48 = scmp.eq.s32.totalorder %s47, 0
      %s50 = sadd.s32 %s49, 1
      %s51 = scalar_select %p48, %s49, %s50
      %p54 = pneg %p48
      %p55 = scmp.eq.s32.totalorder %s18, 1
      %p56 = por %p54, %p55
      %p57 = scmp.ne.s32.totalorder %s49, %s52
      %p58 = scmp.eq.s32.totalorder %s18, 0
      %p59 = por %p57, %p58
      %p60 = scmp.ne.s32.totalorder %s49, %s52
      %p61 = scmp.eq.s32.totalorder %s23, 1
      %p62 = por %p60, %p61
      %p63 = scmp.ne.s32.totalorder %s52, %s53
      %p64 = scmp.eq.s32.totalorder %s23, 0
      %p65 = por %p63, %p64
      %p66 = scmp.ne.s32.totalorder %s52, %s53
      %p67 = scmp.eq.s32.totalorder %s24, 1
      %p68 = por %p66, %p67
      %p70 = scmp.ne.s32.totalorder %s53, %s69
      %p71 = scmp.eq.s32.totalorder %s24, 0
      %p72 = por %p70, %p71
      %s73 = ssub.s32 %s25, %s44
      %s74 = ssub.s32 %s27, %s36
      %s75 = sor.u32 %s73, %s74
      %p76 = scmp.eq.s32.totalorder %s75, 0
      %s78 = sadd.s32 %s77, 1
      %s79 = scalar_select %p76, %s77, %s78
      %p82 = pneg %p76
      %p83 = scmp.eq.s32.totalorder %s18, 1
      %p84 = por %p82, %p83
      %p85 = scmp.ne.s32.totalorder %s77, %s80
      %p86 = scmp.eq.s32.totalorder %s18, 0
      %p87 = por %p85, %p86
      %p88 = scmp.ne.s32.totalorder %s77, %s80
      %p89 = scmp.eq.s32.totalorder %s23, 1
      %p90 = por %p88, %p89
      %p91 = scmp.ne.s32.totalorder %s80, %s81
      %p92 = scmp.eq.s32.totalorder %s23, 0
      %p93 = por %p91, %p92
      %p94 = scmp.ne.s32.totalorder %s80, %s81
      %p95 = scmp.eq.s32.totalorder %s24, 1
      %p96 = por %p94, %p95
      %p98 = scmp.ne.s32.totalorder %s81, %s97
      %p99 = scmp.eq.s32.totalorder %s24, 0
      %p100 = por %p98, %p99
      %s101 = ssub.s32 %s25, %s44
      %s102 = ssub.s32 %s27, %s36
      %s103 = sor.u32 %s101, %s102
      %p104 = scmp.eq.s32.totalorder %s103, 0
      %s106 = sadd.s32 %s105, 1
      %s107 = scalar_select %p104, %s105, %s106
      %p110 = pneg %p104
      %p111 = scmp.eq.s32.totalorder %s18, 1
      %p112 = por %p110, %p111
      %p113 = scmp.ne.s32.totalorder %s105, %s108
      %p114 = scmp.eq.s32.totalorder %s18, 0
      %p115 = por %p113, %p114
      %p116 = scmp.ne.s32.totalorder %s105, %s108
      %p117 = scmp.eq.s32.totalorder %s23, 1
      %p118 = por %p116, %p117
      %p119 = scmp.ne.s32.totalorder %s108, %s109
      %p120 = scmp.eq.s32.totalorder %s23, 0
      %p121 = por %p119, %p120
      %p122 = scmp.ne.s32.totalorder %s108, %s109
      %p123 = scmp.eq.s32.totalorder %s24, 1
      %p124 = por %p122, %p123
      %p126 = scmp.ne.s32.totalorder %s109, %s125
      %p127 = scmp.eq.s32.totalorder %s24, 0
      %p128 = por %p126, %p127
      %s129 = ssub.s32 %s25, %s44
      %s130 = ssub.s32 %s26, %s40
      %s131 = sor.u32 %s129, %s130
      %p132 = scmp.eq.s32.totalorder %s131, 0
      %s134 = sadd.s32 %s133, 1
      %s135 = scalar_select %p132, %s133, %s134
      %p138 = pneg %p132
      %p139 = scmp.eq.s32.totalorder %s18, 1
      %p140 = por %p138, %p139
      %p141 = scmp.ne.s32.totalorder %s133, %s136
      %p142 = scmp.eq.s32.totalorder %s18, 0
      %p143 = por %p141, %p142
      %p144 = scmp.ne.s32.totalorder %s133, %s136
      %p145 = scmp.eq.s32.totalorder %s23, 1
      %p146 = por %p144, %p145
      %p147 = scmp.ne.s32.totalorder %s136, %s137
      %p148 = scmp.eq.s32.totalorder %s23, 0
      %p149 = por %p147, %p148
      %p150 = scmp.ne.s32.totalorder %s136, %s137
      %p151 = scmp.eq.s32.totalorder %s24, 1
      %p152 = por %p150, %p151
      %p154 = scmp.ne.s32.totalorder %s137, %s153
      %p155 = scmp.eq.s32.totalorder %s24, 0
      %p156 = por %p154, %p155
      %p157 = scmp.le.s32.totalorder 1, %s18
      %p158 = scmp.lt.s32.totalorder %s18, 3
      %p159 = pnand %p157, %p158
      %p160 = pneg %p159
      // Predicated region
      $region9: #{tpu_custom_call.1} parent=5 // pred_check
        _
      $region10: #{tpu_custom_call.1} parent=5 // pred_check_branch
        %162 = sbr.rel (%p159) target = $region12
      $region11: #{tpu_custom_call.1} parent=5 // pred_region
        %s163 = ssub.s32 %s18, 1
      $region12: #{tpu_custom_call.1} parent=5 // pred_fallthru
        _
      %p164 = scmp.lt.s32.totalorder %s18, 2
      // Predicated region
      $region13: #{tpu_custom_call.1} parent=5 // pred_check
        %p165 = pneg %p164
      $region14: #{tpu_custom_call.1} parent=5 // pred_check_branch
        %167 = sbr.rel (%p165) target = $region16
      $region15: #{tpu_custom_call.1} parent=5 // pred_region
        // Predicated region
        $region17: #{tpu_custom_call.1} parent=15 // pred_check
          %p168 = pneg %p59
        $region18: #{tpu_custom_call.1} parent=15 // pred_check_branch
          %170 = sbr.rel (%p168) target = $region20
        $region19: #{tpu_custom_call.1} parent=15 // pred_region
          %s171 = sand.u32 %s49, 1
          %s172 = scalar_lea.sflag [#allocation3], %s171
          %s173 = sand.u32 %s49, 1
          %s174 = smul.addr %s173, 8
          %s175 = scalar_lea.vmem [#allocation2], %s174
          %s177 = ssub.s32 128, 128
          %178 = vsyncadd %s172, %s177
          %s179 = sadd.s32 %s26, %s25
          %s180 = smul.addr %s179, 128
          %s181 = scalar_lea.hbm %s0, %s180
          %s183 = sshll.u32 %s175, 4
          %s184 = int_to_ptr.vmem [resolvable:$true] %s183
          %186 = dma.hbm_to_vmem [thread:$0]  %s181, 128, %s184, %s172
        $region20: #{tpu_custom_call.1} parent=15 // pred_fallthru
          _
        // Predicated region
        $region21: #{tpu_custom_call.1} parent=15 // pred_check
          %p187 = pneg %p87
        $region22: #{tpu_custom_call.1} parent=15 // pred_check_branch
          %189 = sbr.rel (%p187) target = $region24
        $region23: #{tpu_custom_call.1} parent=15 // pred_region
          %s190 = sand.u32 %s18, 1
          %s191 = scalar_lea.sflag [#allocation6], %s190
          %s192 = sand.u32 %s77, 1
          %s193 = smul.addr %s192, 8
          %s194 = scalar_lea.vmem [#allocation5], %s193
          %s196 = ssub.s32 128, 128
          %197 = vsyncadd %s191, %s196
          %s198 = sadd.s32 %s27, %s25
          %s199 = smul.addr %s198, 128
          %s200 = scalar_lea.hbm %s1, %s199
          %s202 = sshll.u32 %s194, 4
          %s203 = int_to_ptr.vmem [resolvable:$true] %s202
          %205 = dma.hbm_to_vmem [thread:$0]  %s200, 128, %s203, %s191
        $region24: #{tpu_custom_call.1} parent=15 // pred_fallthru
          _
        // Predicated region
        $region25: #{tpu_custom_call.1} parent=15 // pred_check
          %p206 = pneg %p115
        $region26: #{tpu_custom_call.1} parent=15 // pred_check_branch
          %208 = sbr.rel (%p206) target = $region28
        $region27: #{tpu_custom_call.1} parent=15 // pred_region
          %s209 = sand.u32 %s18, 1
          %s210 = scalar_lea.sflag [#allocation6], %s209
          %s211 = sand.u32 %s105, 1
          %s212 = smul.addr %s211, 8
          %s213 = scalar_lea.vmem [#allocation7], %s212
          %s215 = ssub.s32 128, 128
          %216 = vsyncadd %s210, %s215
          %s217 = sadd.s32 %s27, %s25
          %s218 = smul.addr %s217, 128
          %s219 = scalar_lea.hbm %s2, %s218
          %s221 = sshll.u32 %s213, 4
          %s222 = int_to_ptr.vmem [resolvable:$true] %s221
          %224 = dma.hbm_to_vmem [thread:$0]  %s219, 128, %s222, %s210
        $region28: #{tpu_custom_call.1} parent=15 // pred_fallthru
          _
      $region16: #{tpu_custom_call.1} parent=5 // pred_fallthru
        _
      %p225 = scmp.le.s32.totalorder 1, %s18
      %p226 = scmp.lt.s32.totalorder %s18, 3
      %p227 = pnand %p225, %p226
      %p228 = pneg %p227
      // Predicated region
      $region29: #{tpu_custom_call.1} parent=5 // pred_check
        _
      $region30: #{tpu_custom_call.1} parent=5 // pred_check_branch
        %230 = sbr.rel (%p227) target = $region32
      $region31: #{tpu_custom_call.1} parent=5 // pred_region
        %s231 = ssub.s32 %s18, 1
        %s232 = sand.u32 %s52, 1
        %s233 = scalar_lea.sflag [#allocation3], %s232
        %s234 = sand.u32 %s52, 1
        %s235 = smul.addr %s234, 8
        %s236 = scalar_lea.vmem [#allocation2], %s235
        // Predicated region
        $region33: #{tpu_custom_call.1} parent=31 // pred_check
          %p237 = pneg %p65
        $region34: #{tpu_custom_call.1} parent=31 // pred_check_branch
          %239 = sbr.rel (%p237) target = $region36
        $region35: #{tpu_custom_call.1} parent=31 // pred_region
          %240 = dma.done %s233, 128
        $region36: #{tpu_custom_call.1} parent=31 // pred_fallthru
          _
        %s241 = sand.u32 %s23, 1
        %s242 = scalar_lea.sflag [#allocation6], %s241
        %s243 = sand.u32 %s80, 1
        %s244 = smul.addr %s243, 8
        %s245 = scalar_lea.vmem [#allocation5], %s244
        // Predicated region
        $region37: #{tpu_custom_call.1} parent=31 // pred_check
          %p246 = pneg %p93
        $region38: #{tpu_custom_call.1} parent=31 // pred_check_branch
          %248 = sbr.rel (%p246) target = $region40
        $region39: #{tpu_custom_call.1} parent=31 // pred_region
          %249 = dma.done %s242, 128
        $region40: #{tpu_custom_call.1} parent=31 // pred_fallthru
          _
        %s250 = sand.u32 %s23, 1
        %s251 = scalar_lea.sflag [#allocation6], %s250
        %s252 = sand.u32 %s108, 1
        %s253 = smul.addr %s252, 8
        %s254 = scalar_lea.vmem [#allocation7], %s253
        // Predicated region
        $region41: #{tpu_custom_call.1} parent=31 // pred_check
          %p255 = pneg %p121
        $region42: #{tpu_custom_call.1} parent=31 // pred_check_branch
          %257 = sbr.rel (%p255) target = $region44
        $region43: #{tpu_custom_call.1} parent=31 // pred_region
          %258 = dma.done %s251, 128
        $region44: #{tpu_custom_call.1} parent=31 // pred_fallthru
          _
        %s259 = sand.u32 %s52, 1
        %s260 = scalar_lea.sflag [#allocation3], %s259
        %s261 = sand.u32 %s52, 1
        %s262 = smul.addr %s261, 8
        %s263 = scalar_lea.vmem [#allocation2], %s262
        %p264 = pneg %p65
        %p265 = pneg %p62
        %s266 = sand.u32 %s23, 1
        %s267 = scalar_lea.sflag [#allocation6], %s266
        %s268 = sand.u32 %s80, 1
        %s269 = smul.addr %s268, 8
        %s270 = scalar_lea.vmem [#allocation5], %s269
        %p271 = pneg %p93
        %p272 = pneg %p90
        %s273 = sand.u32 %s23, 1
        %s274 = scalar_lea.sflag [#allocation6], %s273
        %s275 = sand.u32 %s108, 1
        %s276 = smul.addr %s275, 8
        %s277 = scalar_lea.vmem [#allocation7], %s276
        %p278 = pneg %p121
        %p279 = pneg %p118
        %p280 = pneg %p149
        %p281 = pneg %p146
        %s282 = sand.u32 %s136, 1
        %s283 = scalar_lea.sflag [#allocation4], %s282
        %s284 = sand.u32 %s136, 1
        %s285 = smul.addr %s284, 8
        %s286 = scalar_lea.vmem [#allocation8], %s285
        %p287 = scmp.eq.s32.totalorder %s30, 0
        // Predicated region
        $region45: #{tpu_custom_call.1} parent=31 // pred_check
          %p288 = pneg %p287
        $region46: #{tpu_custom_call.1} parent=31 // pred_check_branch
          %290 = sbr.rel (%p288) target = $region48
        $region47: #{tpu_custom_call.1} parent=31 // pred_region
          %291 = vst [vmem:[%s286] sm:$0xff] 0.0
        $region48: #{tpu_custom_call.1} parent=31 // pred_fallthru
          _
        %v292 = vld [vmem:[%s236] sm:$0xff]
        %v293 = vld [vmem:[%s245] sm:$0xff]
        %v294 = vld [vmem:[%s254] sm:$0xff]
        %295 = vmatprep.subr.mxu0 0.0
        %296 = vmatpush1.xpose.msra.mxu0 %v293
        %297 = vmatprep.subr.mxu0 0.0
        %298 = vmatpush1.xpose.msra.mxu0 0.0
        %299 = vmatprep.subr.mxu0 0.0
        %300 = vmatpush1.xpose.msra.mxu0 0.0
        %301 = vmatprep.subr.mxu0 0.0
        %302 = vmatpush1.xpose.msra.mxu0 0.0
        %303 = vmatprep.subr.mxu0 0.0
        %304 = vmatpush1.xpose.msra.mxu0 0.0
        %305 = vmatprep.subr.mxu0 0.0
        %306 = vmatpush1.xpose.msra.mxu0 0.0
        %307 = vmatprep.subr.mxu0 0.0
        %308 = vmatpush1.xpose.msra.mxu0 0.0
        %309 = vmatprep.subr.mxu0 0.0
        %310 = vmatpush1.xpose.msra.mxu0 0.0
        %311 = vmatprep.subr.mxu0 0.0
        %312 = vmatpush1.xpose.msra.mxu0 0.0
        %313 = vmatprep.subr.mxu0 0.0
        %314 = vmatpush1.xpose.msra.mxu0 0.0
        %315 = vmatprep.subr.mxu0 0.0
        %316 = vmatpush1.xpose.msra.mxu0 0.0
        %317 = vmatprep.subr.mxu0 0.0
        %318 = vmatpush1.xpose.msra.mxu0 0.0
        %319 = vmatprep.subr.mxu0 0.0
        %320 = vmatpush1.xpose.msra.mxu0 0.0
        %321 = vmatprep.subr.mxu0 0.0
        %322 = vmatpush1.xpose.msra.mxu0 0.0
        %323 = vmatprep.subr.mxu0 0.0
        %324 = vmatpush1.xpose.msra.mxu0 0.0
        %325 = vmatprep.subr.mxu0 0.0
        %326 = vmatpush1.xpose.msra.mxu0 0.0
        %327 = vmatprep.subr.mxu0 0.0
        %328 = vmatpush1.xpose.msra.mxu0 0.0
        %329 = vmatprep.subr.mxu0 0.0
        %330 = vmatpush1.xpose.msra.mxu0 0.0
        %331 = vmatprep.subr.mxu0 0.0
        %332 = vmatpush1.xpose.msra.mxu0 0.0
        %333 = vmatprep.subr.mxu0 0.0
        %334 = vmatpush1.xpose.msra.mxu0 0.0
        %335 = vmatprep.subr.mxu0 0.0
        %336 = vmatpush1.xpose.msra.mxu0 0.0
        %337 = vmatprep.subr.mxu0 0.0
        %338 = vmatpush1.xpose.msra.mxu0 0.0
        %339 = vmatprep.subr.mxu0 0.0
        %340 = vmatpush1.xpose.msra.mxu0 0.0
        %341 = vmatprep.subr.mxu0 0.0
        %342 = vmatpush1.xpose.msra.mxu0 0.0
        %343 = vmatprep.subr.mxu0 0.0
        %344 = vmatpush1.xpose.msra.mxu0 0.0
        %345 = vmatprep.subr.mxu0 0.0
        %346 = vmatpush1.xpose.msra.mxu0 0.0
        %347 = vmatprep.subr.mxu0 0.0
        %348 = vmatpush1.xpose.msra.mxu0 0.0
        %349 = vmatprep.subr.mxu0 0.0
        %350 = vmatpush1.xpose.msra.mxu0 0.0
        %351 = vmatprep.subr.mxu0 0.0
        %352 = vmatpush1.xpose.msra.mxu0 0.0
        %353 = vmatprep.subr.mxu0 0.0
        %354 = vmatpush1.xpose.msra.mxu0 0.0
        %355 = vmatprep.subr.mxu0 0.0
        %356 = vmatpush1.xpose.msra.mxu0 0.0
        %357 = vmatprep.subr.mxu0 0.0
        %358 = vmatpush1.xpose.msra.mxu0 0.0
        %359 = vmatprep.mubr.f32.mxu0 0.0
        %360 = vmatmul.mubr.f32.gmra.mrb[0].mxu0 %v292
        %v361 = vpop.f32.mrb[0].mxu0
        %v362 = vadd.f32 0.0, %v361
        %v363 = vpop.f32.mrb[0].mxu0
        %364 = vdwg.mxu0
        %v365 = vld [vmem:[%s286] sm:$0xff]
        %vm366 = vcmask 64512
        %v368 = vsel %vm366, %v362, 0
        %370 = vmatprep.subr.mxu0 0.0
        %371 = vmatpush1.msra.mxu0 %v294
        %372 = vmatprep.subr.mxu0 0.0
        %373 = vmatpush1.msra.mxu0 0.0
        %374 = vmatprep.subr.mxu0 0.0
        %375 = vmatpush1.msra.mxu0 0.0
        %376 = vmatprep.subr.mxu0 0.0
        %377 = vmatpush1.msra.mxu0 0.0
        %378 = vmatprep.subr.mxu0 0.0
        %379 = vmatpush1.msra.mxu0 0.0
        %380 = vmatprep.subr.mxu0 0.0
        %381 = vmatpush1.msra.mxu0 0.0
        %382 = vmatprep.subr.mxu0 0.0
        %383 = vmatpush1.msra.mxu0 0.0
        %384 = vmatprep.subr.mxu0 0.0
        %385 = vmatpush1.msra.mxu0 0.0
        %386 = vmatprep.subr.mxu0 0.0
        %387 = vmatpush1.msra.mxu0 0.0
        %388 = vmatprep.subr.mxu0 0.0
        %389 = vmatpush1.msra.mxu0 0.0
        %390 = vmatprep.subr.mxu0 0.0
        %391 = vmatpush1.msra.mxu0 0.0
        %392 = vmatprep.subr.mxu0 0.0
        %393 = vmatpush1.msra.mxu0 0.0
        %394 = vmatprep.subr.mxu0 0.0
        %395 = vmatpush1.msra.mxu0 0.0
        %396 = vmatprep.subr.mxu0 0.0
        %397 = vmatpush1.msra.mxu0 0.0
        %398 = vmatprep.subr.mxu0 0.0
        %399 = vmatpush1.msra.mxu0 0.0
        %400 = vmatprep.subr.mxu0 0.0
        %401 = vmatpush1.msra.mxu0 0.0
        %402 = vmatprep.subr.mxu0 0.0
        %403 = vmatpush1.msra.mxu0 0.0
        %404 = vmatprep.subr.mxu0 0.0
        %405 = vmatpush1.msra.mxu0 0.0
        %406 = vmatprep.subr.mxu0 0.0
        %407 = vmatpush1.msra.mxu0 0.0
        %408 = vmatprep.subr.mxu0 0.0
        %409 = vmatpush1.msra.mxu0 0.0
        %410 = vmatprep.subr.mxu0 0.0
        %411 = vmatpush1.msra.mxu0 0.0
        %412 = vmatprep.subr.mxu0 0.0
        %413 = vmatpush1.msra.mxu0 0.0
        %414 = vmatprep.subr.mxu0 0.0
        %415 = vmatpush1.msra.mxu0 0.0
        %416 = vmatprep.subr.mxu0 0.0
        %417 = vmatpush1.msra.mxu0 0.0
        %418 = vmatprep.subr.mxu0 0.0
        %419 = vmatpush1.msra.mxu0 0.0
        %420 = vmatprep.subr.mxu0 0.0
        %421 = vmatpush1.msra.mxu0 0.0
        %422 = vmatprep.subr.mxu0 0.0
        %423 = vmatpush1.msra.mxu0 0.0
        %424 = vmatprep.subr.mxu0 0.0
        %425 = vmatpush1.msra.mxu0 0.0
        %426 = vmatprep.subr.mxu0 0.0
        %427 = vmatpush1.msra.mxu0 0.0
        %428 = vmatprep.subr.mxu0 0.0
        %429 = vmatpush1.msra.mxu0 0.0
        %430 = vmatprep.subr.mxu0 0.0
        %431 = vmatpush1.msra.mxu0 0.0
        %432 = vmatprep.subr.mxu0 0.0
        %433 = vmatpush1.msra.mxu0 0.0
        %434 = vmatprep.mubr.f32.mxu0 0.0
        %435 = vmatmul.mubr.f32.gmra.mrb[0].mxu0 %v368
        %v436 = vpop.f32.mrb[0].mxu0
        %v437 = vadd.f32 0.0, %v436
        %v438 = vpop.f32.mrb[0].mxu0
        %439 = vdwg.mxu0
        %v440 = vadd.f32 %v365, %v437
        %441 = vst [vmem:[%s286] sm:$0xff] %v440
        // Predicated region
        $region49: #{tpu_custom_call.1} parent=31 // pred_check
          %p442 = pneg %p287
        $region50: #{tpu_custom_call.1} parent=31 // pred_check_branch
          %444 = sbr.rel (%p442) target = $region52
        $region51: #{tpu_custom_call.1} parent=31 // pred_region
          %v445 = vld [vmem:[%s286] sm:$0xff]
          %v446 = vmul.f32 %v445, 0.17677669
          %447 = vst [vmem:[%s286] sm:$0xff] %v446
        $region52: #{tpu_custom_call.1} parent=31 // pred_fallthru
          _
        %s448 = sand.u32 %s136, 1
        %s449 = scalar_lea.sflag [#allocation4], %s448
        %s450 = sand.u32 %s136, 1
        %s451 = smul.addr %s450, 8
        %s452 = scalar_lea.vmem [#allocation8], %s451
        // Predicated region
        $region53: #{tpu_custom_call.1} parent=31 // pred_check
          %p453 = pneg %p146
        $region54: #{tpu_custom_call.1} parent=31 // pred_check_branch
          %455 = sbr.rel (%p453) target = $region56
        $region55: #{tpu_custom_call.1} parent=31 // pred_region
          %s457 = ssub.s32 128, 128
          %458 = vsyncadd %s449, %s457
          %s459 = sadd.s32 %s29, %s28
          %s460 = smul.addr %s459, 128
          %s461 = scalar_lea.hbm %s3, %s460
          %s463 = sshll.u32 %s452, 4
          %s464 = int_to_ptr.vmem [resolvable:$true] %s463
          %466 = dma.vmem_to_hbm [thread:$0]  %s464, 128, %s461, %s449
        $region56: #{tpu_custom_call.1} parent=31 // pred_fallthru
          _
      $region32: #{tpu_custom_call.1} parent=5 // pred_fallthru
        _
      %p467 = scmp.le.s32.totalorder 2, %s18
      // Predicated region
      $region57: #{tpu_custom_call.1} parent=5 // pred_check
        %p468 = pneg %p467
      $region58: #{tpu_custom_call.1} parent=5 // pred_check_branch
        %470 = sbr.rel (%p468) target = $region60
      $region59: #{tpu_custom_call.1} parent=5 // pred_region
        %s471 = ssub.s32 %s18, 2
        // Predicated region
        $region61: #{tpu_custom_call.1} parent=59 // pred_check
          %p472 = pneg %p152
        $region62: #{tpu_custom_call.1} parent=59 // pred_check_branch
          %474 = sbr.rel (%p472) target = $region64
        $region63: #{tpu_custom_call.1} parent=59 // pred_region
          %s475 = sand.u32 %s137, 1
          %s476 = scalar_lea.sflag [#allocation4], %s475
          %s477 = sand.u32 %s137, 1
          %s478 = smul.addr %s477, 8
          %s479 = scalar_lea.vmem [#allocation8], %s478
          %480 = dma.done %s476, 128
        $region64: #{tpu_custom_call.1} parent=59 // pred_fallthru
          _
      $region60: #{tpu_custom_call.1} parent=5 // pred_fallthru
        _
    $region6: #{tpu_custom_call.1} parent=1 // loop_footer
      %s22 = sadd.s32 1, %s18
    $region7: #{tpu_custom_call.1} parent=1 // loop_footer_branch
      %17 = sbr.rel target = $region3
    $region8: #{tpu_custom_call.1} parent=1 // loop_exit
      _
    %481 = vsyncpa [#allocation3], 1
    %s482 = scalar_lea.sflag [#allocation3], 1
    %483 = vsyncpa %s482, 1
    %484 = vsyncpa [#allocation6], 1
    %s485 = scalar_lea.sflag [#allocation6], 1
    %486 = vsyncpa %s485, 1
    %487 = vsyncpa [#allocation4], 1
    %s488 = scalar_lea.sflag [#allocation4], 1
    %489 = vsyncpa %s488, 1

</llo_original>
